<compile_context>
chip_gen: v7x
topology: tpu7x:2x2x1
jax: 0.10.0
libtpu: 0.0.40
codegen_flags: <defaults>
</compile_context>

<pallas_src>
import functools

import jax
import jax.numpy as jnp
from jax.experimental import pallas as pl
from jax.experimental.pallas import tpu as pltpu


# ----------------------------------------------------------------------------- helpers
def _rup(x, m):
    return (x + m - 1) // m * m


def _same_pad(size, k, s):
    """TF 'SAME' padding (pad more on the bottom/right)."""
    out = -(-size // s)
    pad = max((out - 1) * s + k - size, 0)
    return pad // 2, pad - pad // 2


def _pick_tile(dim, cap, unit=128):
    """Largest multiple of `unit` <= cap that divides `dim` (dim is a multiple of unit)."""
    best = unit
    t = unit
    while t <= min(cap, dim):
        if dim % t == 0:
            best = t
        t += unit
    return best


def _extract_patches(x, kh, kw, stride):
    """x: (N,H,W,C) -> (N,oh,ow,kh*kw,C) patches with TF SAME padding (stem / ref only)."""
    N, H, W, C = x.shape
    pt, pb = _same_pad(H, kh, stride)
    pw0, pw1 = _same_pad(W, kw, stride)
    xp = jnp.pad(x, ((0, 0), (pt, pb), (pw0, pw1), (0, 0)))
    oh = (H + pt + pb - kh) // stride + 1
    ow = (W + pw0 + pw1 - kw) // stride + 1
    cols = []
    for dy in range(kh):
        for dx in range(kw):
            sl = jax.lax.slice(
                xp,
                (0, dy, dx, 0),
                (N, dy + (oh - 1) * stride + 1, dx + (ow - 1) * stride + 1, C),
                (1, stride, stride, 1),
            )
            cols.append(sl)
    return jnp.stack(cols, axis=3), oh, ow


# ----------------------------------------------------------------------------- kernels
def _bmm_kernel(*refs, act, has_gate):
    """Batched matmul: out[n] = act(((x[n] * gate[n]) @ w) * scale + bias).

    Grid: (batch, M-tiles, N-tiles, K-tiles); f32 accumulator resident over the K axis.
    """
    if has_gate:
        g_ref, x_ref, w_ref, s_ref, b_ref, o_ref, acc_ref = refs
    else:
        x_ref, w_ref, s_ref, b_ref, o_ref, acc_ref = refs

    @pl.when(pl.program_id(3) == 0)
    def _():
        acc_ref[...] = jnp.zeros_like(acc_ref)

    xv = x_ref[0]                       # (tm, tk) bf16
    if has_gate:
        xv = xv * g_ref[0]              # (1, tk) bf16 gate, broadcast over rows
    acc_ref[...] += jnp.dot(xv, w_ref[...], preferred_element_type=jnp.float32)

    @pl.when(pl.program_id(3) == pl.num_programs(3) - 1)
    def _():
        y = acc_ref[...] * s_ref[...] + b_ref[...]
        if act == "swish":
            y = y * jax.nn.sigmoid(y)
        o_ref[0] = y.astype(o_ref.dtype)


def _dw_kernel(x_ref, w_ref, s_ref, b_ref, o_ref, p_ref, *, k, stride, oh, ow, inv_hw):
    """Depthwise conv (folded BN + swish) with fused global-average-pool output.

    x_ref: (stride^2, Hq, Wq, tc) phase-decimated padded input (one image, one C-tile).
    """
    tc = o_ref.shape[-1]
    acc = jnp.zeros((oh, ow, tc), jnp.float32)
    for dy in range(k):
        for dx in range(k):
            ry, qy = dy % stride, dy // stride
            rx, qx = dx % stride, dx // stride
            ph = ry * stride + rx
            tap = x_ref[ph, qy:qy + oh, qx:qx + ow, :].astype(jnp.float32)
            t = dy * k + dx
            acc = acc + tap * w_ref[t:t + 1, :].astype(jnp.float32)
    y = acc * s_ref[...] + b_ref[...]
    y = y * jax.nn.sigmoid(y)                       # swish
    o_ref[0] = y.astype(o_ref.dtype)
    pooled = jnp.sum(jnp.sum(y, axis=1), axis=0, keepdims=True) * inv_hw   # (1, tc)
    p_ref[0] = pooled


def _se_kernel(p_ref, w1_ref, b1_ref, w2_ref, b2_ref, g_ref):
    """Both SE FC layers fused: gate = sigmoid(swish(p @ w1 + b1) @ w2 + b2)."""
    h = jnp.dot(p_ref[...], w1_ref[...], preferred_element_type=jnp.float32) + b1_ref[...]
    h = h * jax.nn.sigmoid(h)
    g = jnp.dot(h, w2_ref[...], preferred_element_type=jnp.float32) + b2_ref[...]
    g_ref[...] = jax.nn.sigmoid(g).astype(g_ref.dtype)


# ----------------------------------------------------------------------------- wrappers
def batched_matmul_bn_act(x, w, scale, bias, act="linear", gate=None):
    """x: (N, M, K) (extra K lanes must be zero). w: (K0, Cout) f32. scale/bias: (Cout,).
    gate: optional (N, 1, K).  Returns (N, M, rup(Cout,128)) bf16, zero in padded lanes."""
    N, M, K = x.shape
    K0, Cout = w.shape
    Kp = _rup(K, 128)
    Cp_out = _rup(Cout, 128)
    if Kp != K:
        x = jnp.pad(x, ((0, 0), (0, 0), (0, Kp - K)))
        if gate is not None:
            gate = jnp.pad(gate, ((0, 0), (0, 0), (0, Kp - K)))
    tm = min(256, _rup(M, 8))
    Mp = _rup(M, tm)
    if Mp != M:
        x = jnp.pad(x, ((0, 0), (0, Mp - M), (0, 0)))
    tk = _pick_tile(Kp, 512)
    tn = _pick_tile(Cp_out, 256)

    x = x.astype(jnp.bfloat16)
    wp = jnp.pad(w, ((0, Kp - K0), (0, Cp_out - Cout))).astype(jnp.bfloat16)
    sp = jnp.pad(scale, (0, Cp_out - Cout)).astype(jnp.float32).reshape(1, Cp_out)
    bp = jnp.pad(bias, (0, Cp_out - Cout)).astype(jnp.float32).reshape(1, Cp_out)

    has_gate = gate is not None
    in_specs = []
    args = []
    if has_gate:
        in_specs.append(pl.BlockSpec((1, 1, tk), lambda n, i, j, kk: (n, 0, kk)))
        args.append(gate.astype(jnp.bfloat16))
    in_specs += [
        pl.BlockSpec((1, tm, tk), lambda n, i, j, kk: (n, i, kk)),
        pl.BlockSpec((tk, tn), lambda n, i, j, kk: (kk, j)),
        pl.BlockSpec((1, tn), lambda n, i, j, kk: (0, j)),
        pl.BlockSpec((1, tn), lambda n, i, j, kk: (0, j)),
    ]
    args += [x, wp, sp, bp]

    out = pl.pallas_call(
        functools.partial(_bmm_kernel, act=act, has_gate=has_gate),
        out_shape=jax.ShapeDtypeStruct((N, Mp, Cp_out), jnp.bfloat16),
        grid_spec=pltpu.PrefetchScalarGridSpec(
            num_scalar_prefetch=0,
            grid=(N, Mp // tm, Cp_out // tn, Kp // tk),
            in_specs=in_specs,
            out_specs=pl.BlockSpec((1, tm, tn), lambda n, i, j, kk: (n, i, j)),
            scratch_shapes=[pltpu.VMEM((tm, tn), jnp.float32)],
        ),
        compiler_params=pltpu.CompilerParams(
            dimension_semantics=("parallel", "parallel", "parallel", "arbitrary")
        ),
    )(*args)
    if Mp != M:
        out = out[:, :M, :]
    return out


def conv1x1_bn_act(x, w, scale, bias, act="swish", gate=None):
    """1x1 conv with folded BN (+ optional per-image SE gate on the input channels)."""
    N, H, W, Cp = x.shape
    y = batched_matmul_bn_act(x.reshape(N, H * W, Cp), w, scale, bias, act=act, gate=gate)
    return y.reshape(N, H, W, y.shape[-1])


def depthwise_bn_act(x, w, scale, bias, k, stride):
    """Depthwise conv + folded BN + swish, fused GAP.  x: (N,H,W,Cp) bf16 channel-padded.
    Returns (dw_out (N,oh,ow,Cp) bf16, pooled (N,1,Cp) f32)."""
    N, H, W, Cp = x.shape
    C = w.shape[-1]
    s = stride
    pt, pb = _same_pad(H, k, s)
    pw0, pw1 = _same_pad(W, k, s)
    oh, ow = -(-H // s), -(-W // s)
    xpad = jnp.pad(x, ((0, 0), (pt, pb), (pw0, pw1), (0, 0)))
    Hp, Wp = H + pt + pb, W + pw0 + pw1

    if s == 1:
        xph, Hq, Wq = xpad, Hp, Wp
    else:
        # phase-decimate so every kernel tap becomes an unstrided static window
        Hq, Wq = -(-Hp // s), -(-Wp // s)
        phases = []
        for ry in range(s):
            for rx in range(s):
                p_ = xpad[:, ry::s, rx::s, :]
                p_ = jnp.pad(
                    p_, ((0, 0), (0, Hq - p_.shape[1]), (0, Wq - p_.shape[2]), (0, 0))
                )
                phases.append(p_)
        xph = jnp.stack(phases, axis=1).reshape(N * s * s, Hq, Wq, Cp)

    wq = jnp.pad(w.reshape(k * k, C), ((0, 0), (0, Cp - C))).astype(jnp.float32)
    sp = jnp.pad(scale, (0, Cp - C)).astype(jnp.float32).reshape(1, Cp)
    bp = jnp.pad(bias, (0, Cp - C)).astype(jnp.float32).reshape(1, Cp)
    tc = 128

    dw_out, pooled = pl.pallas_call(
        functools.partial(
            _dw_kernel, k=k, stride=s, oh=oh, ow=ow, inv_hw=1.0 / float(oh * ow)
        ),
        out_shape=(
            jax.ShapeDtypeStruct((N, oh, ow, Cp), jnp.bfloat16),
            jax.ShapeDtypeStruct((N, 1, Cp), jnp.float32),
        ),
        grid_spec=pltpu.PrefetchScalarGridSpec(
            num_scalar_prefetch=0,
            grid=(N, Cp // tc),
            in_specs=[
                pl.BlockSpec((s * s, Hq, Wq, tc), lambda n, c: (n, 0, 0, c)),
                pl.BlockSpec((k * k, tc), lambda n, c: (0, c)),
                pl.BlockSpec((1, tc), lambda n, c: (0, c)),
                pl.BlockSpec((1, tc), lambda n, c: (0, c)),
            ],
            out_specs=[
                pl.BlockSpec((1, oh, ow, tc), lambda n, c: (n, 0, 0, c)),
                pl.BlockSpec((1, 1, tc), lambda n, c: (n, 0, c)),
            ],
        ),
        compiler_params=pltpu.CompilerParams(
            dimension_semantics=("parallel", "parallel")
        ),
    )(xph, wq, sp, bp)
    return dw_out, pooled


def se_gate(pooled, w1, b1, w2, b2):
    """pooled: (N,1,Cp) f32 (zero in padded lanes) -> gate (N,1,Cp) bf16."""
    N, _, Cp = pooled.shape
    mid, se_c = w1.shape
    Crp = _rup(se_c, 128)
    Nb = _rup(N, 8)
    p2 = jnp.pad(pooled.reshape(N, Cp), ((0, Nb - N), (0, 0)))
    w1p = jnp.pad(w1, ((0, Cp - mid), (0, Crp - se_c))).astype(jnp.float32)
    b1p = jnp.pad(b1, (0, Crp - se_c)).astype(jnp.float32).reshape(1, Crp)
    w2p = jnp.pad(w2, ((0, Crp - se_c), (0, Cp - mid))).astype(jnp.float32)
    b2p = jnp.pad(b2, (0, Cp - mid)).astype(jnp.float32).reshape(1, Cp)

    gate = pl.pallas_call(
        _se_kernel,
        out_shape=jax.ShapeDtypeStruct((Nb, Cp), jnp.bfloat16),
        grid_spec=pltpu.PrefetchScalarGridSpec(
            num_scalar_prefetch=0,
            grid=(1,),
            in_specs=[
                pl.BlockSpec((Nb, Cp), lambda i: (0, 0)),
                pl.BlockSpec((Cp, Crp), lambda i: (0, 0)),
                pl.BlockSpec((1, Crp), lambda i: (0, 0)),
                pl.BlockSpec((Crp, Cp), lambda i: (0, 0)),
                pl.BlockSpec((1, Cp), lambda i: (0, 0)),
            ],
            out_specs=pl.BlockSpec((Nb, Cp), lambda i: (0, 0)),
        ),
    )(p2, w1p, b1p, w2p, b2p)
    return gate[:N].reshape(N, 1, Cp)


def stem_conv(x_img, w, scale, bias):
    """3x3/s2 stem conv with ImageNet mean/std normalization folded into the weights."""
    mean = jnp.array([0.485, 0.456, 0.406], jnp.float32)
    std = jnp.array([0.229, 0.224, 0.225], jnp.float32)
    w_f = w / std[None, None, :, None]                               # (3,3,3,Cout)
    b_adj = -jnp.sum(w_f * mean[None, None, :, None], axis=(0, 1, 2))
    bias_f = bias + scale * b_adj

    patches, oh, ow = _extract_patches(x_img.astype(jnp.bfloat16), 3, 3, 2)
    N = x_img.shape[0]
    xm = patches.reshape(N, oh * ow, 27)
    y = batched_matmul_bn_act(xm, w_f.reshape(27, -1), scale, bias_f, act="swish")
    return y.reshape(N, oh, ow, y.shape[-1])


def mbconv(x, p, k, stride, expand):
    h = x
    if expand != 1:
        h = conv1x1_bn_act(h, p["w_exp"], p["s_exp"], p["b_exp"], act="swish")
    h, pooled = depthwise_bn_act(h, p["w_dw"], p["s_dw"], p["b_dw"], k, stride)
    gate = se_gate(pooled, p["w_se1"], p["b_se1"], p["w_se2"], p["b_se2"])
    h = conv1x1_bn_act(h, p["w_proj"], p["s_proj"], p["b_proj"], act="linear", gate=gate)
    return h


# ----------------------------------------------------------------------------- model config
STEM_CH = 48
HEAD_CH = 2048
# (expand_ratio, in_ch, out_ch, kernel, stride)  — tf_efficientnet_b5 stage heads
STAGES = [
    (1, 48, 24, 3, 1),
    (6, 24, 40, 3, 2),
    (6, 40, 64, 5, 2),
    (6, 64, 128, 3, 2),
    (6, 128, 176, 5, 1),
    (6, 176, 304, 5, 2),
    (6, 304, 512, 3, 1),
]


class _KeyGen:
    def __init__(self, key):
        self.key = key

    def __call__(self):
        self.key, k = jax.random.split(self.key)
        return k


def _fc(kg, cin, cout):
    w = jax.random.normal(kg(), (cin, cout), jnp.float32) * (1.0 / cin) ** 0.5
    b = 0.05 * jax.random.normal(kg(), (cout,), jnp.float32)
    return w, b


def _pw(kg, cin, cout):
    return jax.random.normal(kg(), (cin, cout), jnp.float32) * (2.0 / cin) ** 0.5


def _bn_fold(kg, c, eps=1e-3):
    gamma = 1.0 + 0.05 * jax.random.normal(kg(), (c,), jnp.float32)
    beta = 0.05 * jax.random.normal(kg(), (c,), jnp.float32)
    mean = 0.05 * jax.random.normal(kg(), (c,), jnp.float32)
    var = 1.0 + 0.05 * jax.random.uniform(kg(), (c,), jnp.float32)
    scale = gamma / jnp.sqrt(var + eps)
    bias = beta - mean * scale
    return scale, bias


def init_params(seed=0):
    kg = _KeyGen(jax.random.PRNGKey(seed))
    params = {}
    fan = 3 * 3 * 3
    params["stem_w"] = jax.random.normal(kg(), (3, 3, 3, STEM_CH), jnp.float32) * (2.0 / fan) ** 0.5
    params["stem_s"], params["stem_b"] = _bn_fold(kg, STEM_CH)

    blocks = []
    for expand, cin, cout, k, _ in STAGES:
        mid = cin * expand
        se_c = max(1, cin // 4)
        p = {}
        if expand != 1:
            p["w_exp"] = _pw(kg, cin, mid)
            p["s_exp"], p["b_exp"] = _bn_fold(kg, mid)
        p["w_dw"] = jax.random.normal(kg(), (k, k, mid), jnp.float32) * (2.0 / (k * k)) ** 0.5
        p["s_dw"], p["b_dw"] = _bn_fold(kg, mid)
        p["w_se1"], p["b_se1"] = _fc(kg, mid, se_c)
        p["w_se2"], p["b_se2"] = _fc(kg, se_c, mid)
        p["w_proj"] = _pw(kg, mid, cout)
        p["s_proj"], p["b_proj"] = _bn_fold(kg, cout)
        blocks.append(p)
    params["blocks"] = blocks

    params["head_w"] = _pw(kg, STAGES[-1][2], HEAD_CH)
    return params


def _to_nchw(x, c):
    return jnp.transpose(x[..., :c].astype(jnp.float32), (0, 3, 1, 2))


def efficientnet_encoder(x_nchw, params):
    """NCHW in, tuple of 5 NCHW feature maps out (24, 40, 64, 176, 2048 channels)."""
    x = jnp.transpose(x_nchw.astype(jnp.float32), (0, 2, 3, 1))      # -> NHWC
    h = stem_conv(x, params["stem_w"], params["stem_s"], params["stem_b"])

    feats = []
    for i, (expand, cin, cout, k, stride) in enumerate(STAGES):
        h = mbconv(h, params["blocks"][i], k, stride, expand)
        feats.append((h, cout))

    head = conv1x1_bn_act(
        h, params["head_w"],
        jnp.ones((HEAD_CH,), jnp.float32), jnp.zeros((HEAD_CH,), jnp.float32),
        act="linear",
    )  # features[11]: raw conv_head output (before bn2/act2)

    outs = [feats[0], feats[1], feats[2], feats[4], (head, HEAD_CH)]
    return tuple(_to_nchw(o, c) for o, c in outs)


# ----------------------------------------------------------------------------- main
def _assert_close(a, b, tol, name):
    a = a.astype(jnp.float32)
    b = b.astype(jnp.float32)
    err = float(jnp.max(jnp.abs(a - b)))
    ref = max(1.0, float(jnp.max(jnp.abs(b))))
    assert err <= tol * ref, (name, err, ref)


if __name__ == "__main__":
    # --- quick correctness checks of the two main kernels against pure-JAX refs ----------
    kk = jax.random.split(jax.random.PRNGKey(42), 9)
    xc = (0.5 * jax.random.normal(kk[0], (2, 64, 144))).astype(jnp.bfloat16)
    wc = 0.1 * jax.random.normal(kk[1], (144, 40))
    sc = 1.0 + 0.1 * jax.random.normal(kk[2], (40,))
    bc = 0.1 * jax.random.normal(kk[3], (40,))
    gc = jax.nn.sigmoid(jax.random.normal(kk[4], (2, 1, 144))).astype(jnp.bfloat16)
    got = batched_matmul_bn_act(xc, wc, sc, bc, act="swish", gate=gc)[..., :40]
    xf = xc.astype(jnp.float32) * gc.astype(jnp.float32)
    ref = jnp.einsum("nmk,kc->nmc", xf, wc.astype(jnp.bfloat16).astype(jnp.float32)) * sc + bc
    ref = ref * jax.nn.sigmoid(ref)
    _assert_close(got, ref, 0.05, "bmm")

    xd = jax.nn.sigmoid(jax.random.normal(kk[5], (2, 9, 9, 128))).astype(jnp.bfloat16)
    wd = 0.3 * jax.random.normal(kk[6], (3, 3, 128))
    sd = 1.0 + 0.1 * jax.random.normal(kk[7], (128,))
    bd = 0.1 * jax.random.normal(kk[8], (128,))
    dw_got, pool_got = depthwise_bn_act(xd, wd, sd, bd, 3, 2)
    patches, _, _ = _extract_patches(xd.astype(jnp.float32), 3, 3, 2)
    yref = jnp.einsum("nhwtc,tc->nhwc", patches, wd.reshape(9, 128)) * sd + bd
    yref = yref * jax.nn.sigmoid(yref)
    _assert_close(dw_got, yref, 0.05, "dw")
    _assert_close(pool_got[:, 0, :], jnp.mean(yref, axis=(1, 2)), 0.05, "dw_pool")

    # --- full encoder ---------------------------------------------------------------------
    key = jax.random.PRNGKey(0)
    N, C, H, W = 2, 3, 64, 64
    x = jax.random.uniform(key, (N, C, H, W), jnp.float32)

    params = init_params(seed=0)
    enc = jax.jit(efficientnet_encoder)
    feats = jax.block_until_ready(enc(x, params))

    expected = [
        (N, 24, H // 2, W // 2),
        (N, 40, H // 4, W // 4),
        (N, 64, H // 8, W // 8),
        (N, 176, H // 16, W // 16),
        (N, 2048, H // 32, W // 32),
    ]
    for f, e in zip(feats, expected):
        assert f.shape == e, (f.shape, e)
        assert bool(jnp.all(jnp.isfinite(f)))

    print("KERNEL_OK")
</pallas_src>

<mosaic_0001>
module attributes {stable_mosaic.version = 11 : i64} {
  func.func @_bmm_kernel(%arg0: i32, %arg1: i32, %arg2: i32, %arg3: i32, %arg4: memref<1x1x256xbf16, #tpu.memory_space<vmem>>, %arg5: memref<1x64x256xbf16, #tpu.memory_space<vmem>>, %arg6: memref<256x128xbf16, #tpu.memory_space<vmem>>, %arg7: memref<1x128xf32, #tpu.memory_space<vmem>>, %arg8: memref<1x128xf32, #tpu.memory_space<vmem>>, %arg9: memref<1x64x128xbf16, #tpu.memory_space<vmem>>, %arg10: memref<64x128xf32, #tpu.memory_space<vmem>>) attributes {dimension_semantics = [#tpu.dimension_semantics<parallel>, #tpu.dimension_semantics<parallel>, #tpu.dimension_semantics<parallel>, #tpu.dimension_semantics<arbitrary>], iteration_bounds = array<i64: 2, 1, 1, 1>, scalar_prefetch = 0 : i64, scratch_operands = 1 : i64, tpu.core_type = #tpu.core_type<tc>, window_params = [{transform_indices = @transform_0, window_bounds = array<i64: 1, 1, 256>}, {transform_indices = @transform_1, window_bounds = array<i64: 1, 64, 256>}, {transform_indices = @transform_2, window_bounds = array<i64: 256, 128>}, {transform_indices = @transform_3, window_bounds = array<i64: 1, 128>}, {transform_indices = @transform_4, window_bounds = array<i64: 1, 128>}, {transform_indices = @transform_5, window_bounds = array<i64: 1, 64, 128>}]} {
    %c0_i32 = arith.constant 0 : i32
    %0 = arith.cmpi eq, %arg3, %c0_i32 : i32
    %1 = arith.extui %0 : i1 to i32
    %c0_i32_0 = arith.constant 0 : i32
    %2 = arith.cmpi ne, %1, %c0_i32_0 : i32
    scf.if %2 {
      %cst_14 = arith.constant 0.000000e+00 : f32
      %17 = vector.broadcast %cst_14 : f32 to vector<64x128xf32>
      %c0_15 = arith.constant 0 : index
      %c0_16 = arith.constant 0 : index
      %18 = vector.load %arg10[%c0_15, %c0_16] : memref<64x128xf32, #tpu.memory_space<vmem>>, vector<64x128xf32>
      tpu.vector_store %arg10[%c0_15, %c0_16], %17 {strides = array<i32>} : memref<64x128xf32, #tpu.memory_space<vmem>>, vector<64x128xf32>,
    } else {
    }
    %c0 = arith.constant 0 : index
    %c0_1 = arith.constant 0 : index
    %c0_2 = arith.constant 0 : index
    %3 = vector.load %arg5[%c0, %c0_1, %c0_2] : memref<1x64x256xbf16, #tpu.memory_space<vmem>>, vector<1x64x256xbf16>
    %4 = vector.shape_cast %3 : vector<1x64x256xbf16> to vector<64x256xbf16>
    %c0_3 = arith.constant 0 : index
    %c0_4 = arith.constant 0 : index
    %c0_5 = arith.constant 0 : index
    %5 = vector.load %arg4[%c0_3, %c0_4, %c0_5] : memref<1x1x256xbf16, #tpu.memory_space<vmem>>, vector<1x1x256xbf16>
    %6 = vector.shape_cast %5 : vector<1x1x256xbf16> to vector<1x256xbf16>
    %7 = vector.broadcast %6 : vector<1x256xbf16> to vector<64x256xbf16>
    %8 = arith.mulf %4, %7 : vector<64x256xbf16>
    %c0_6 = arith.constant 0 : index
    %c0_7 = arith.constant 0 : index
    %9 = vector.load %arg10[%c0_6, %c0_7] : memref<64x128xf32, #tpu.memory_space<vmem>>, vector<64x128xf32>
    %c0_8 = arith.constant 0 : index
    %c0_9 = arith.constant 0 : index
    %10 = vector.load %arg6[%c0_8, %c0_9] : memref<256x128xbf16, #tpu.memory_space<vmem>>, vector<256x128xbf16>
    %cst = arith.constant dense<0.000000e+00> : vector<64x128xf32>
    %11 = tpu.matmul %8, %10, %cst {dimension_numbers = #tpu.dot_dimension_numbers<[1], [0], [0], [1], [0, 0, 1, 1], [], []>} : vector<64x256xbf16>, vector<256x128xbf16>, vector<64x128xf32> -> vector<64x128xf32>
    %12 = arith.addf %9, %11 : vector<64x128xf32>
    %c0_10 = arith.constant 0 : index
    %c0_11 = arith.constant 0 : index
    %13 = vector.load %arg10[%c0_10, %c0_11] : memref<64x128xf32, #tpu.memory_space<vmem>>, vector<64x128xf32>
    tpu.vector_store %arg10[%c0_10, %c0_11], %12 {strides = array<i32>} : memref<64x128xf32, #tpu.memory_space<vmem>>, vector<64x128xf32>,
    %c0_i32_12 = arith.constant 0 : i32
    %14 = arith.cmpi eq, %arg3, %c0_i32_12 : i32
    %15 = arith.extui %14 : i1 to i32
    %c0_i32_13 = arith.constant 0 : i32
    %16 = arith.cmpi ne, %15, %c0_i32_13 : i32
    scf.if %16 {
      %c0_14 = arith.constant 0 : index
      %c0_15 = arith.constant 0 : index
      %17 = vector.load %arg10[%c0_14, %c0_15] : memref<64x128xf32, #tpu.memory_space<vmem>>, vector<64x128xf32>
      %c0_16 = arith.constant 0 : index
      %c0_17 = arith.constant 0 : index
      %18 = vector.load %arg7[%c0_16, %c0_17] : memref<1x128xf32, #tpu.memory_space<vmem>>, vector<1x128xf32>
      %19 = vector.broadcast %18 : vector<1x128xf32> to vector<64x128xf32>
      %20 = arith.mulf %17, %19 : vector<64x128xf32>
      %c0_18 = arith.constant 0 : index
      %c0_19 = arith.constant 0 : index
      %21 = vector.load %arg8[%c0_18, %c0_19] : memref<1x128xf32, #tpu.memory_space<vmem>>, vector<1x128xf32>
      %22 = vector.broadcast %21 : vector<1x128xf32> to vector<64x128xf32>
      %23 = arith.addf %20, %22 : vector<64x128xf32>
      %24 = arith.negf %23 : vector<64x128xf32>
      %25 = math.exp %24 : vector<64x128xf32>
      %cst_20 = arith.constant 1.000000e+00 : f32
      %26 = vector.broadcast %cst_20 : f32 to vector<64x128xf32>
      %27 = arith.addf %26, %25 : vector<64x128xf32>
      %28 = arith.divf %26, %27 : vector<64x128xf32>
      %29 = arith.mulf %23, %28 : vector<64x128xf32>
      %30 = arith.truncf %29 : vector<64x128xf32> to vector<64x128xbf16>
      %c0_21 = arith.constant 0 : index
      %c0_22 = arith.constant 0 : index
      %c0_23 = arith.constant 0 : index
      %31 = vector.load %arg9[%c0_21, %c0_22, %c0_23] : memref<1x64x128xbf16, #tpu.memory_space<vmem>>, vector<1x64x128xbf16>
      %32 = vector.shape_cast %31 : vector<1x64x128xbf16> to vector<64x128xbf16>
      %33 = vector.shape_cast %30 : vector<64x128xbf16> to vector<1x64x128xbf16>
      tpu.vector_store %arg9[%c0_21, %c0_22, %c0_23], %33 {strides = array<i32>} : memref<1x64x128xbf16, #tpu.memory_space<vmem>>, vector<1x64x128xbf16>,
    } else {
    }
    return
  }
  func.func @transform_0(%arg0: i32, %arg1: i32, %arg2: i32, %arg3: i32) -> (i32, i32, i32) {
    %c0_i32 = arith.constant 0 : i32
    %c0_i32_0 = arith.constant 0 : i32
    return %arg0, %c0_i32, %arg3 : i32, i32, i32
  }
  func.func @transform_1(%arg0: i32, %arg1: i32, %arg2: i32, %arg3: i32) -> (i32, i32, i32) {
    %c0_i32 = arith.constant 0 : i32
    return %arg0, %arg1, %arg3 : i32, i32, i32
  }
  func.func @transform_2(%arg0: i32, %arg1: i32, %arg2: i32, %arg3: i32) -> (i32, i32) {
    %c0_i32 = arith.constant 0 : i32
    return %arg3, %arg2 : i32, i32
  }
  func.func @transform_3(%arg0: i32, %arg1: i32, %arg2: i32, %arg3: i32) -> (i32, i32) {
    %c0_i32 = arith.constant 0 : i32
    %c0_i32_0 = arith.constant 0 : i32
    return %c0_i32, %arg2 : i32, i32
  }
  func.func @transform_4(%arg0: i32, %arg1: i32, %arg2: i32, %arg3: i32) -> (i32, i32) {
    %c0_i32 = arith.constant 0 : i32
    %c0_i32_0 = arith.constant 0 : i32
    return %c0_i32, %arg2 : i32, i32
  }
  func.func @transform_5(%arg0: i32, %arg1: i32, %arg2: i32, %arg3: i32) -> (i32, i32, i32) {
    %c0_i32 = arith.constant 0 : i32
    return %arg0, %arg1, %arg2 : i32, i32, i32
  }
}

</mosaic_0001>

<llo_original>
// kernel: tpu_custom_call.1
$region0: #{tpu_custom_call.1}
  #allocation0 [shape = 'u32[]', space=smem, size = 0x4, offset = 0x4, fixed_abs, tag = 'smem constant byte address 0x4 - core index']
  #allocation1 [shape = 'u32[144,128]{1,0:T(1,128)}', space=vmem, size = 0x12000, scoped, tag = 'internal scratch']
  #allocation2 [shape = 'f32[64,128]{1,0:T(8,128)}', space=vmem, size = 0x8000, scoped, tag = 'scratch operand']
  %s0 = inlined_call_operand.vmem [shape: bf16[2,1,256], index: 0, kind: input, shape index: {}]
  %s1 = inlined_call_operand.hbm [shape: bf16[2,64,256], index: 1, kind: input, shape index: {}]
  %s2 = inlined_call_operand.hbm [shape: bf16[256,128], index: 2, kind: input, shape index: {}]
  %s3 = inlined_call_operand.vmem [shape: f32[1,128], index: 3, kind: input, shape index: {}]
  %s4 = inlined_call_operand.vmem [shape: f32[1,128], index: 4, kind: input, shape index: {}]
  %s5 = inlined_call_operand.hbm [shape: bf16[2,64,128], index: 5, kind: output, shape index: {}]
  %s6 = sld [smem:[#allocation0]]
  $region69: #{tpu_custom_call.1} parent=0
    _
  %s8 = ssub.s32 1, %s6
  %s9 = scalar_select 0, %s8, %s6
  $region1: #{tpu_custom_call.1} parent=0
    #allocation3 [shape = 'u8[65536]{0}', space=vmem, size = 0x10000, scoped, tag = 'input window, operand 1']
    #allocation4 [shape = 's32[2]{0}', space=sflag, size = 0x8, scoped, tag = 'scoped memory for tpu_custom_call.1']
    #allocation5 [shape = 's32[2]{0}', space=sflag, size = 0x8, scoped, tag = 'scoped memory for tpu_custom_call.1']
    #allocation6 [shape = 'u8[65536]{0}', space=vmem, size = 0x10000, scoped, tag = 'input window, operand 2, single buffered']
    #allocation7 [shape = 's32[1]{0}', space=sflag, size = 0x4, scoped, tag = 'scoped memory for tpu_custom_call.1']
    #allocation8 [shape = 'u8[32768]{0}', space=vmem, size = 0x8000, scoped, tag = 'output window, operand 0']
    %10 = vsyncpa [#allocation4], 0
    %s11 = scalar_lea.sflag [#allocation4], 1
    %12 = vsyncpa %s11, 0
    %13 = vsyncpa [#allocation7], 0
    %14 = vsyncpa [#allocation5], 0
    %s15 = scalar_lea.sflag [#allocation5], 1
    %16 = vsyncpa %s15, 0
    loop: start=0, step=1, limit=4
    $region2: #{tpu_custom_call.1} parent=1 // loop_pre_header
      _
    $region3: #{tpu_custom_call.1} parent=1 // loop_header
      %s18 = sphi 0, %s22
      %p19 = scmp.ge.s32.totalorder %s18, 4
      %s25 = sphi 0, %s51
      %s26 = sphi 0, %s47
      %s27 = sphi 0, %s43
      %s28 = sphi 0, %s39
      %s29 = sphi 0, %s25
      %s30 = sphi 0, %s26
      %s31 = sphi 0, %s27
      %s32 = sphi 0, %s28
      %s33 = sphi 0, %s29
      %s34 = sphi 0, %s30
      %s35 = sphi 0, %s31
      %s36 = sphi 0, %s32
      %s56 = sphi 0, %s58
      %s59 = sphi 0, %s56
      %s60 = sphi 0, %s59
      %s76 = sphi 0, %s60
      %s86 = sphi 0, %s88
      %s89 = sphi 0, %s86
      %s90 = sphi 0, %s89
      %s106 = sphi 0, %s90
      %s114 = sphi 0, %s116
      %s117 = sphi 0, %s114
      %s118 = sphi 0, %s117
      %s134 = sphi 0, %s118
      %s140 = sphi 0, %s142
      %s143 = sphi 0, %s140
      %s144 = sphi 0, %s143
      %s160 = sphi 0, %s144
      %s166 = sphi 0, %s168
      %s169 = sphi 0, %s166
      %s170 = sphi 0, %s169
      %s186 = sphi 0, %s170
      %s196 = sphi 0, %s198
      %s199 = sphi 0, %s196
      %s200 = sphi 0, %s199
      %s216 = sphi 0, %s200
    $region4: #{tpu_custom_call.1} parent=1 // loop_header_branch
      %21 = sbr.rel (%p19) target = $region8
    $region5: #{tpu_custom_call.1} parent=1 // loop_body
      %s23 = ssub.s32 %s18, 1
      %s24 = ssub.s32 %s18, 2
      %s37 = sadd.s32 1, %s28
      %p38 = scmp.ge.s32.totalorder %s37, 1
      %s39 = scalar_select %p38, 0, %s37
      %s40 = sadd.s32 1, %s27
      %s41 = scalar_select %p38, %s40, %s27
      %p42 = scmp.ge.s32.totalorder %s41, 1
      %s43 = scalar_select %p42, 0, %s41
      %s44 = sadd.s32 1, %s26
      %s45 = scalar_select %p42, %s44, %s26
      %p46 = scmp.ge.s32.totalorder %s45, 1
      %s47 = scalar_select %p46, 0, %s45
      %s48 = sadd.s32 1, %s25
      %s49 = scalar_select %p46, %s48, %s25
      %p50 = scmp.ge.s32.totalorder %s49, 2
      %s51 = scalar_select %p50, 0, %s49
      %s52 = ssub.s32 %s25, %s51
      %s53 = ssub.s32 %s28, %s39
      %s54 = sor.u32 %s52, %s53
      %p55 = scmp.eq.s32.totalorder %s54, 0
      %s57 = sadd.s32 %s56, 1
      %s58 = scalar_select %p55, %s56, %s57
      %p61 = pneg %p55
      %p62 = scmp.eq.s32.totalorder %s18, 1
      %p63 = por %p61, %p62
      %p64 = scmp.ne.s32.totalorder %s56, %s59
      %p65 = scmp.eq.s32.totalorder %s18, 0
      %p66 = por %p64, %p65
      %p67 = scmp.ne.s32.totalorder %s56, %s59
      %p68 = scmp.eq.s32.totalorder %s23, 1
      %p69 = por %p67, %p68
      %p70 = scmp.ne.s32.totalorder %s59, %s60
      %p71 = scmp.eq.s32.totalorder %s23, 0
      %p72 = por %p70, %p71
      %p73 = scmp.ne.s32.totalorder %s59, %s60
      %p74 = scmp.eq.s32.totalorder %s24, 1
      %p75 = por %p73, %p74
      %p77 = scmp.ne.s32.totalorder %s60, %s76
      %p78 = scmp.eq.s32.totalorder %s24, 0
      %p79 = por %p77, %p78
      %s80 = ssub.s32 %s25, %s51
      %s81 = ssub.s32 %s26, %s47
      %s82 = sor.u32 %s80, %s81
      %s83 = ssub.s32 %s28, %s39
      %s84 = sor.u32 %s82, %s83
      %p85 = scmp.eq.s32.totalorder %s84, 0
      %s87 = sadd.s32 %s86, 1
      %s88 = scalar_select %p85, %s86, %s87
      %p91 = pneg %p85
      %p92 = scmp.eq.s32.totalorder %s18, 1
      %p93 = por %p91, %p92
      %p94 = scmp.ne.s32.totalorder %s86, %s89
      %p95 = scmp.eq.s32.totalorder %s18, 0
      %p96 = por %p94, %p95
      %p97 = scmp.ne.s32.totalorder %s86, %s89
      %p98 = scmp.eq.s32.totalorder %s23, 1
      %p99 = por %p97, %p98
      %p100 = scmp.ne.s32.totalorder %s89, %s90
      %p101 = scmp.eq.s32.totalorder %s23, 0
      %p102 = por %p100, %p101
      %p103 = scmp.ne.s32.totalorder %s89, %s90
      %p104 = scmp.eq.s32.totalorder %s24, 1
      %p105 = por %p103, %p104
      %p107 = scmp.ne.s32.totalorder %s90, %s106
      %p108 = scmp.eq.s32.totalorder %s24, 0
      %p109 = por %p107, %p108
      %s110 = ssub.s32 %s28, %s39
      %s111 = ssub.s32 %s27, %s43
      %s112 = sor.u32 %s110, %s111
      %p113 = scmp.eq.s32.totalorder %s112, 0
      %s115 = sadd.s32 %s114, 1
      %s116 = scalar_select %p113, %s114, %s115
      %p119 = pneg %p113
      %p120 = scmp.eq.s32.totalorder %s18, 1
      %p121 = por %p119, %p120
      %p122 = scmp.ne.s32.totalorder %s114, %s117
      %p123 = scmp.eq.s32.totalorder %s18, 0
      %p124 = por %p122, %p123
      %p125 = scmp.ne.s32.totalorder %s114, %s117
      %p126 = scmp.eq.s32.totalorder %s23, 1
      %p127 = por %p125, %p126
      %p128 = scmp.ne.s32.totalorder %s117, %s118
      %p129 = scmp.eq.s32.totalorder %s23, 0
      %p130 = por %p128, %p129
      %p131 = scmp.ne.s32.totalorder %s117, %s118
      %p132 = scmp.eq.s32.totalorder %s24, 1
      %p133 = por %p131, %p132
      %p135 = scmp.ne.s32.totalorder %s118, %s134
      %p136 = scmp.eq.s32.totalorder %s24, 0
      %p137 = por %p135, %p136
      %s138 = ssub.s32 %s27, %s43
      %p139 = scmp.eq.s32.totalorder %s138, 0
      %s141 = sadd.s32 %s140, 1
      %s142 = scalar_select %p139, %s140, %s141
      %p145 = pneg %p139
      %p146 = scmp.eq.s32.totalorder %s18, 1
      %p147 = por %p145, %p146
      %p148 = scmp.ne.s32.totalorder %s140, %s143
      %p149 = scmp.eq.s32.totalorder %s18, 0
      %p150 = por %p148, %p149
      %p151 = scmp.ne.s32.totalorder %s140, %s143
      %p152 = scmp.eq.s32.totalorder %s23, 1
      %p153 = por %p151, %p152
      %p154 = scmp.ne.s32.totalorder %s143, %s144
      %p155 = scmp.eq.s32.totalorder %s23, 0
      %p156 = por %p154, %p155
      %p157 = scmp.ne.s32.totalorder %s143, %s144
      %p158 = scmp.eq.s32.totalorder %s24, 1
      %p159 = por %p157, %p158
      %p161 = scmp.ne.s32.totalorder %s144, %s160
      %p162 = scmp.eq.s32.totalorder %s24, 0
      %p163 = por %p161, %p162
      %s164 = ssub.s32 %s27, %s43
      %p165 = scmp.eq.s32.totalorder %s164, 0
      %s167 = sadd.s32 %s166, 1
      %s168 = scalar_select %p165, %s166, %s167
      %p171 = pneg %p165
      %p172 = scmp.eq.s32.totalorder %s18, 1
      %p173 = por %p171, %p172
      %p174 = scmp.ne.s32.totalorder %s166, %s169
      %p175 = scmp.eq.s32.totalorder %s18, 0
      %p176 = por %p174, %p175
      %p177 = scmp.ne.s32.totalorder %s166, %s169
      %p178 = scmp.eq.s32.totalorder %s23, 1
      %p179 = por %p177, %p178
      %p180 = scmp.ne.s32.totalorder %s169, %s170
      %p181 = scmp.eq.s32.totalorder %s23, 0
      %p182 = por %p180, %p181
      %p183 = scmp.ne.s32.totalorder %s169, %s170
      %p184 = scmp.eq.s32.totalorder %s24, 1
      %p185 = por %p183, %p184
      %p187 = scmp.ne.s32.totalorder %s170, %s186
      %p188 = scmp.eq.s32.totalorder %s24, 0
      %p189 = por %p187, %p188
      %s190 = ssub.s32 %s25, %s51
      %s191 = ssub.s32 %s26, %s47
      %s192 = sor.u32 %s190, %s191
      %s193 = ssub.s32 %s27, %s43
      %s194 = sor.u32 %s192, %s193
      %p195 = scmp.eq.s32.totalorder %s194, 0
      %s197 = sadd.s32 %s196, 1
      %s198 = scalar_select %p195, %s196, %s197
      %p201 = pneg %p195
      %p202 = scmp.eq.s32.totalorder %s18, 1
      %p203 = por %p201, %p202
      %p204 = scmp.ne.s32.totalorder %s196, %s199
      %p205 = scmp.eq.s32.totalorder %s18, 0
      %p206 = por %p204, %p205
      %p207 = scmp.ne.s32.totalorder %s196, %s199
      %p208 = scmp.eq.s32.totalorder %s23, 1
      %p209 = por %p207, %p208
      %p210 = scmp.ne.s32.totalorder %s199, %s200
      %p211 = scmp.eq.s32.totalorder %s23, 0
      %p212 = por %p210, %p211
      %p213 = scmp.ne.s32.totalorder %s199, %s200
      %p214 = scmp.eq.s32.totalorder %s24, 1
      %p215 = por %p213, %p214
      %p217 = scmp.ne.s32.totalorder %s200, %s216
      %p218 = scmp.eq.s32.totalorder %s24, 0
      %p219 = por %p217, %p218
      %p220 = scmp.le.s32.totalorder 1, %s18
      %p221 = scmp.lt.s32.totalorder %s18, 3
      %p222 = pnand %p220, %p221
      %p223 = pneg %p222
      // Predicated region
      $region9: #{tpu_custom_call.1} parent=5 // pred_check
        _
      $region10: #{tpu_custom_call.1} parent=5 // pred_check_branch
        %225 = sbr.rel (%p222) target = $region12
      $region11: #{tpu_custom_call.1} parent=5 // pred_region
        %s226 = ssub.s32 %s18, 1
        // Predicated region
        $region13: #{tpu_custom_call.1} parent=11 // pred_check
          %p227 = pneg %p130
        $region14: #{tpu_custom_call.1} parent=11 // pred_check_branch
          %229 = sbr.rel (%p227) target = $region16
        $region15: #{tpu_custom_call.1} parent=11 // pred_region
          %s230 = smul.u32 32, %s32
          %s232 = ssub.s32 2048, 2048
          %233 = vsyncadd [#allocation7], %s232
          %s234 = sadd.s32 %s31, %s230
          %s235 = smul.addr %s234, 64
          %s236 = scalar_lea.hbm %s2, %s235
          %s237 = sshll.u32 [#allocation6], 4
          %s238 = int_to_ptr.vmem [resolvable:$true] %s237
          %243 = dma.hbm_to_vmem [thread:$0]  %s236, 2048, %s238, [#allocation7], 64, 64, 4
        $region16: #{tpu_custom_call.1} parent=11 // pred_fallthru
          _
        // Predicated region
        $region17: #{tpu_custom_call.1} parent=11 // pred_check
          %p244 = pneg %p156
        $region18: #{tpu_custom_call.1} parent=11 // pred_check_branch
          %246 = sbr.rel (%p244) target = $region20
        $region19: #{tpu_custom_call.1} parent=11 // pred_region
          %p247 = scmp.lt.s32.totalorder %s31, 0
          %s248 = scalar_select %p247, %s31, 0
          %s249 = scalar_lea.vmem %s3, %s248
        $region20: #{tpu_custom_call.1} parent=11 // pred_fallthru
          _
        // Predicated region
        $region21: #{tpu_custom_call.1} parent=11 // pred_check
          %p250 = pneg %p182
        $region22: #{tpu_custom_call.1} parent=11 // pred_check_branch
          %252 = sbr.rel (%p250) target = $region24
        $region23: #{tpu_custom_call.1} parent=11 // pred_region
          %p253 = scmp.lt.s32.totalorder %s31, 0
          %s254 = scalar_select %p253, %s31, 0
          %s255 = scalar_lea.vmem %s4, %s254
        $region24: #{tpu_custom_call.1} parent=11 // pred_fallthru
          _
      $region12: #{tpu_custom_call.1} parent=5 // pred_fallthru
        _
      %p256 = scmp.lt.s32.totalorder %s18, 2
      // Predicated region
      $region25: #{tpu_custom_call.1} parent=5 // pred_check
        %p257 = pneg %p256
      $region26: #{tpu_custom_call.1} parent=5 // pred_check_branch
        %259 = sbr.rel (%p257) target = $region28
      $region27: #{tpu_custom_call.1} parent=5 // pred_region
        // Predicated region
        $region29: #{tpu_custom_call.1} parent=27 // pred_check
          %p260 = pneg %p66
        $region30: #{tpu_custom_call.1} parent=27 // pred_check_branch
          %262 = sbr.rel (%p260) target = $region32
        $region31: #{tpu_custom_call.1} parent=27 // pred_region
          %s263 = smul.u32 2, %s28
          %p264 = scmp.lt.s32.totalorder %s25, 1
          %s265 = scalar_select %p264, %s25, 1
          %p266 = scmp.lt.s32.totalorder %s263, 1
          %s267 = scalar_select %p266, %s263, 1
          %s268 = smul.addr %s265, 2
          %s269 = sadd.s32 %s267, %s268
          %s270 = scalar_lea.vmem %s0, %s269
          %s271 = smul.u32 2, %s28
        $region32: #{tpu_custom_call.1} parent=27 // pred_fallthru
          _
        // Predicated region
        $region33: #{tpu_custom_call.1} parent=27 // pred_check
          %p272 = pneg %p96
        $region34: #{tpu_custom_call.1} parent=27 // pred_check_branch
          %274 = sbr.rel (%p272) target = $region36
        $region35: #{tpu_custom_call.1} parent=27 // pred_region
          %s275 = sand.u32 %s86, 1
          %s276 = scalar_lea.sflag [#allocation4], %s275
          %s277 = sand.u32 %s86, 1
          %s278 = smul.addr %s277, 64
          %s279 = scalar_lea.vmem [#allocation3], %s278
          %s280 = smul.u32 8, %s26
          %s281 = smul.u32 2, %s28
          %s283 = ssub.s32 1024, 1024
          %284 = vsyncadd %s276, %s283
          %s285 = smul.addr %s280, 2
          %s286 = sadd.s32 %s281, %s285
          %s287 = smul.addr %s25, 16
          %s288 = sadd.s32 %s286, %s287
          %s289 = smul.addr %s288, 64
          %s290 = scalar_lea.hbm %s1, %s289
          %s291 = sshll.u32 %s279, 4
          %s292 = int_to_ptr.vmem [resolvable:$true] %s291
          %297 = dma.hbm_to_vmem [thread:$0]  %s290, 1024, %s292, %s276, 128, 128, 8
        $region36: #{tpu_custom_call.1} parent=27 // pred_fallthru
          _
      $region28: #{tpu_custom_call.1} parent=5 // pred_fallthru
        _
      %p298 = scmp.le.s32.totalorder 1, %s18
      %p299 = scmp.lt.s32.totalorder %s18, 3
      %p300 = pnand %p298, %p299
      %p301 = pneg %p300
      // Predicated region
      $region37: #{tpu_custom_call.1} parent=5 // pred_check
        _
      $region38: #{tpu_custom_call.1} parent=5 // pred_check_branch
        %303 = sbr.rel (%p300) target = $region40
      $region39: #{tpu_custom_call.1} parent=5 // pred_region
        %s304 = ssub.s32 %s18, 1
        %s305 = sand.u32 %s89, 1
        %s306 = scalar_lea.sflag [#allocation4], %s305
        %s307 = sand.u32 %s89, 1
        %s308 = smul.addr %s307, 64
        %s309 = scalar_lea.vmem [#allocation3], %s308
        // Predicated region
        $region41: #{tpu_custom_call.1} parent=39 // pred_check
          %p310 = pneg %p102
        $region42: #{tpu_custom_call.1} parent=39 // pred_check_branch
          %312 = sbr.rel (%p310) target = $region44
        $region43: #{tpu_custom_call.1} parent=39 // pred_region
          %313 = dma.done %s306, 1024
        $region44: #{tpu_custom_call.1} parent=39 // pred_fallthru
          _
        // Predicated region
        $region45: #{tpu_custom_call.1} parent=39 // pred_check
          %p314 = pneg %p130
        $region46: #{tpu_custom_call.1} parent=39 // pred_check_branch
          %316 = sbr.rel (%p314) target = $region48
        $region47: #{tpu_custom_call.1} parent=39 // pred_region
          %317 = dma.done [#allocation7], 2048
        $region48: #{tpu_custom_call.1} parent=39 // pred_fallthru
          _
        %s318 = smul.u32 2, %s32
        %p319 = scmp.lt.s32.totalorder %s29, 1
        %s320 = scalar_select %p319, %s29, 1
        %p321 = scmp.lt.s32.totalorder %s318, 1
        %s322 = scalar_select %p321, %s318, 1
        %s323 = smul.addr %s320, 2
        %s324 = sadd.s32 %s322, %s323
        %s325 = scalar_lea.vmem %s0, %s324
        %p326 = pneg %p72
        %p327 = pneg %p69
        %s328 = sand.u32 %s89, 1
        %s329 = scalar_lea.sflag [#allocation4], %s328
        %s330 = sand.u32 %s89, 1
        %s331 = smul.addr %s330, 64
        %s332 = scalar_lea.vmem [#allocation3], %s331
        %p333 = pneg %p102
        %p334 = pneg %p99
        %p335 = pneg %p130
        %p336 = pneg %p127
        %p337 = scmp.lt.s32.totalorder %s31, 0
        %s338 = scalar_select %p337, %s31, 0
        %s339 = scalar_lea.vmem %s3, %s338
        %p340 = pneg %p156
        %p341 = pneg %p153
        %p342 = scmp.lt.s32.totalorder %s31, 0
        %s343 = scalar_select %p342, %s31, 0
        %s344 = scalar_lea.vmem %s4, %s343
        %p345 = pneg %p182
        %p346 = pneg %p179
        %p347 = pneg %p212
        %p348 = pneg %p209
        %s349 = sand.u32 %s199, 1
        %s350 = scalar_lea.sflag [#allocation5], %s349
        %s351 = sand.u32 %s199, 1
        %s352 = smul.addr %s351, 32
        %s353 = scalar_lea.vmem [#allocation8], %s352
        %s354 = smul.u32 2, %s32
        %p355 = scmp.lt.s32.totalorder %s29, 1
        %s356 = scalar_select %p355, %s29, 1
        %p357 = scmp.lt.s32.totalorder %s354, 1
        %s358 = scalar_select %p357, %s354, 1
        %s359 = smul.addr %s356, 2
        %s360 = sadd.s32 %s358, %s359
        %s361 = scalar_lea.vmem %s0, %s360
        %s362 = smul.u32 2, %s32
        %s363 = smul.u32 8, %s30
        %s364 = smul.u32 2, %s32
        %s365 = smul.u32 32, %s32
        %p366 = scmp.lt.s32.totalorder %s31, 0
        %s367 = scalar_select %p366, %s31, 0
        %s368 = scalar_lea.vmem %s3, %s367
        %p369 = scmp.lt.s32.totalorder %s31, 0
        %s370 = scalar_select %p369, %s31, 0
        %s371 = scalar_lea.vmem %s4, %s370
        %s372 = smul.u32 8, %s30
        %p374 = scmp.eq.s32.totalorder %s32, 0
        // Predicated region
        $region49: #{tpu_custom_call.1} parent=39 // pred_check
          %p375 = pneg %p374
        $region50: #{tpu_custom_call.1} parent=39 // pred_check_branch
          %377 = sbr.rel (%p375) target = $region52
        $region51: #{tpu_custom_call.1} parent=39 // pred_region
          %378 = vst [vmem:[#allocation2] sm:$0xff] 0.0
          %379 = vst [vmem:[#allocation2 + $0x8] sm:$0xff] 0.0
          %380 = vst [vmem:[#allocation2 + $0x10] sm:$0xff] 0.0
          %381 = vst [vmem:[#allocation2 + $0x18] sm:$0xff] 0.0
          %382 = vst [vmem:[#allocation2 + $0x20] sm:$0xff] 0.0
          %383 = vst [vmem:[#allocation2 + $0x28] sm:$0xff] 0.0
          %384 = vst [vmem:[#allocation2 + $0x30] sm:$0xff] 0.0
          %385 = vst [vmem:[#allocation2 + $0x38] sm:$0xff] 0.0
        $region52: #{tpu_custom_call.1} parent=39 // pred_fallthru
          _
        %v386 = vld [vmem:[%s309] sm:$0xff]
        %v387 = vld [vmem:[%s309 + $0x8] sm:$0xff]
        %v388 = vld [vmem:[%s309 + $0x10] sm:$0xff]
        %v389 = vld [vmem:[%s309 + $0x18] sm:$0xff]
        %v390 = vld [vmem:[%s309 + $0x20] sm:$0xff]
        %v391 = vld [vmem:[%s309 + $0x28] sm:$0xff]
        %v392 = vld [vmem:[%s309 + $0x30] sm:$0xff]
        %v393 = vld [vmem:[%s309 + $0x38] sm:$0xff]
        %v394 = vld [vmem:[%s361] sm:$0x3]
        %v397 = vunpack.c.l.s4 1966171168
        %v398 = vunpack.c.0.s8 %v397
        %v399 = vlaneseq
        %v400 = vshrl.u32 %v399, 7
        %v401 = vsub.s32 %v398, %v400
        %v402 = vrot.slane %v394, %v401
        %v403 = vcombine.high %v402, %v402
        %v405 = vunpack.c.l.s4 1966171168
        %v406 = vunpack.c.0.s8 %v405
        %v407 = vlaneseq
        %v408 = vshrl.u32 %v407, 7
        %v409 = vsub.s32 %v406, %v408
        %v410 = vrot.slane %v402, %v409
        %v412 = vunpack.c.l.s4 1966171168
        %v413 = vunpack.c.0.s8 %v412
        %v414 = vlaneseq
        %v415 = vshrl.u32 %v414, 7
        %v416 = vsub.s32 %v413, %v415
        %v417 = vrot.slane %v403, %v416
        %v419 = vpack.i.b16 %v410, %v410
        %v421 = vlaneseq
        %v422 = vshrl.u32 %v421, 7
        %v423 = vsub.s32 0, %v422
        %v424 = vrot.slane %v419, %v423
        %v426 = vpack.i.b16 %v417, %v417
        %v428 = vlaneseq
        %v429 = vshrl.u32 %v428, 7
        %v430 = vsub.s32 0, %v429
        %v431 = vrot.slane %v426, %v430
        %v434 = vunpack.c.l.b16 %v424
        %v435 = vunpack.c.l.b16 %v431
        %v436 = vpack.c.b16 %v435, %v434
        %v438 = vmul.bf16 %v386, %v436
        %v439 = vmul.bf16 %v387, %v436
        %v440 = vmul.bf16 %v388, %v436
        %v441 = vmul.bf16 %v389, %v436
        %v442 = vmul.bf16 %v390, %v436
        %v443 = vmul.bf16 %v391, %v436
        %v444 = vmul.bf16 %v392, %v436
        %v445 = vmul.bf16 %v393, %v436
        %v446 = vld [vmem:[#allocation2] sm:$0xff]
        %v447 = vld [vmem:[#allocation2 + $0x8] sm:$0xff]
        %v448 = vld [vmem:[#allocation2 + $0x10] sm:$0xff]
        %v449 = vld [vmem:[#allocation2 + $0x18] sm:$0xff]
        %v450 = vld [vmem:[#allocation2 + $0x20] sm:$0xff]
        %v451 = vld [vmem:[#allocation2 + $0x28] sm:$0xff]
        %v452 = vld [vmem:[#allocation2 + $0x30] sm:$0xff]
        %v453 = vld [vmem:[#allocation2 + $0x38] sm:$0xff]
        %v454 = vld [vmem:[#allocation6] sm:$0xf]
        %v455 = vld [vmem:[#allocation6 + $0x4] sm:$0xf]
        %v456 = vld [vmem:[#allocation6 + $0x8] sm:$0xf]
        %v457 = vld [vmem:[#allocation6 + $0xc] sm:$0xf]
        %v458 = vld [vmem:[#allocation6 + $0x10] sm:$0xf]
        %v459 = vld [vmem:[#allocation6 + $0x14] sm:$0xf]
        %v460 = vld [vmem:[#allocation6 + $0x18] sm:$0xf]
        %v461 = vld [vmem:[#allocation6 + $0x1c] sm:$0xf]
        %v462 = vld [vmem:[#allocation6 + $0x20] sm:$0xf]
        %v463 = vld [vmem:[#allocation6 + $0x24] sm:$0xf]
        %v464 = vld [vmem:[#allocation6 + $0x28] sm:$0xf]
        %v465 = vld [vmem:[#allocation6 + $0x2c] sm:$0xf]
        %v466 = vld [vmem:[#allocation6 + $0x30] sm:$0xf]
        %v467 = vld [vmem:[#allocation6 + $0x34] sm:$0xf]
        %v468 = vld [vmem:[#allocation6 + $0x38] sm:$0xf]
        %v469 = vld [vmem:[#allocation6 + $0x3c] sm:$0xf]
        %v470 = vld [vmem:[#allocation6 + $0x40] sm:$0xf]
        %v471 = vld [vmem:[#allocation6 + $0x44] sm:$0xf]
        %v472 = vld [vmem:[#allocation6 + $0x48] sm:$0xf]
        %v473 = vld [vmem:[#allocation6 + $0x4c] sm:$0xf]
        %v474 = vld [vmem:[#allocation6 + $0x50] sm:$0xf]
        %v475 = vld [vmem:[#allocation6 + $0x54] sm:$0xf]
        %v476 = vld [vmem:[#allocation6 + $0x58] sm:$0xf]
        %v477 = vld [vmem:[#allocation6 + $0x5c] sm:$0xf]
        %v478 = vld [vmem:[#allocation6 + $0x60] sm:$0xf]
        %v479 = vld [vmem:[#allocation6 + $0x64] sm:$0xf]
        %v480 = vld [vmem:[#allocation6 + $0x68] sm:$0xf]
        %v481 = vld [vmem:[#allocation6 + $0x6c] sm:$0xf]
        %v482 = vld [vmem:[#allocation6 + $0x70] sm:$0xf]
        %v483 = vld [vmem:[#allocation6 + $0x74] sm:$0xf]
        %v484 = vld [vmem:[#allocation6 + $0x78] sm:$0xf]
        %v485 = vld [vmem:[#allocation6 + $0x7c] sm:$0xf]
        %v494 = vunpack.c.l.b16 %v438
        %v495 = vunpack.c.h.b16 %v438
        %v496 = vunpack.c.l.b16 %v439
        %v497 = vunpack.c.h.b16 %v439
        %v498 = vunpack.c.l.b16 %v440
        %v499 = vunpack.c.h.b16 %v440
        %v500 = vunpack.c.l.b16 %v441
        %v501 = vunpack.c.h.b16 %v441
        %v502 = vunpack.c.l.b16 %v442
        %v503 = vunpack.c.h.b16 %v442
        %v504 = vunpack.c.l.b16 %v443
        %v505 = vunpack.c.h.b16 %v443
        %v506 = vunpack.c.l.b16 %v444
        %v507 = vunpack.c.h.b16 %v444
        %v508 = vunpack.c.l.b16 %v445
        %v509 = vunpack.c.h.b16 %v445
        %v510 = vpack.c.b16 %v496, %v494
        %v511 = vpack.c.b16 %v497, %v495
        %v512 = vpack.c.b16 %v500, %v498
        %v513 = vpack.c.b16 %v501, %v499
        %v514 = vpack.c.b16 %v504, %v502
        %v515 = vpack.c.b16 %v505, %v503
        %v516 = vpack.c.b16 %v508, %v506
        %v517 = vpack.c.b16 %v509, %v507
        %v558 = vunpack.c.l.b16 %v454
        %v559 = vunpack.c.l.b16 %v455
        %v560 = vunpack.c.l.b16 %v456
        %v561 = vunpack.c.l.b16 %v457
        %v562 = vunpack.c.l.b16 %v458
        %v563 = vunpack.c.l.b16 %v459
        %v564 = vunpack.c.l.b16 %v460
        %v565 = vunpack.c.l.b16 %v461
        %v566 = vunpack.c.l.b16 %v462
        %v567 = vunpack.c.l.b16 %v463
        %v568 = vunpack.c.l.b16 %v464
        %v569 = vunpack.c.l.b16 %v465
        %v570 = vunpack.c.l.b16 %v466
        %v571 = vunpack.c.l.b16 %v467
        %v572 = vunpack.c.l.b16 %v468
        %v573 = vunpack.c.l.b16 %v469
        %v574 = vunpack.c.l.b16 %v470
        %v575 = vunpack.c.l.b16 %v471
        %v576 = vunpack.c.l.b16 %v472
        %v577 = vunpack.c.l.b16 %v473
        %v578 = vunpack.c.l.b16 %v474
        %v579 = vunpack.c.l.b16 %v475
        %v580 = vunpack.c.l.b16 %v476
        %v581 = vunpack.c.l.b16 %v477
        %v582 = vunpack.c.l.b16 %v478
        %v583 = vunpack.c.l.b16 %v479
        %v584 = vunpack.c.l.b16 %v480
        %v585 = vunpack.c.l.b16 %v481
        %v586 = vunpack.c.l.b16 %v482
        %v587 = vunpack.c.l.b16 %v483
        %v588 = vunpack.c.l.b16 %v484
        %v589 = vunpack.c.l.b16 %v485
        %v590 = vpack.c.b16 %v559, %v558
        %v591 = vpack.c.b16 %v561, %v560
        %v592 = vpack.c.b16 %v563, %v562
        %v593 = vpack.c.b16 %v565, %v564
        %v594 = vpack.c.b16 %v567, %v566
        %v595 = vpack.c.b16 %v569, %v568
        %v596 = vpack.c.b16 %v571, %v570
        %v597 = vpack.c.b16 %v573, %v572
        %v598 = vpack.c.b16 %v575, %v574
        %v599 = vpack.c.b16 %v577, %v576
        %v600 = vpack.c.b16 %v579, %v578
        %v601 = vpack.c.b16 %v581, %v580
        %v602 = vpack.c.b16 %v583, %v582
        %v603 = vpack.c.b16 %v585, %v584
        %v604 = vpack.c.b16 %v587, %v586
        %v605 = vpack.c.b16 %v589, %v588
        %622 = vmatprep.subr.bf16.mxu0 0
        %623 = vmatpush1.bf16.msra.mxu0 %v590
        %624 = vmatprep.subr.bf16.mxu0 0
        %625 = vmatpush1.bf16.msra.mxu0 %v591
        %626 = vmatprep.subr.bf16.mxu0 0
        %627 = vmatpush1.bf16.msra.mxu0 %v592
        %628 = vmatprep.subr.bf16.mxu0 0
        %629 = vmatpush1.bf16.msra.mxu0 %v593
        %630 = vmatprep.subr.bf16.mxu0 0
        %631 = vmatpush1.bf16.msra.mxu0 %v594
        %632 = vmatprep.subr.bf16.mxu0 0
        %633 = vmatpush1.bf16.msra.mxu0 %v595
        %634 = vmatprep.subr.bf16.mxu0 0
        %635 = vmatpush1.bf16.msra.mxu0 %v596
        %636 = vmatprep.subr.bf16.mxu0 0
        %637 = vmatpush1.bf16.msra.mxu0 %v597
        %638 = vmatprep.subr.bf16.mxu0 0
        %639 = vmatpush1.bf16.msra.mxu0 %v598
        %640 = vmatprep.subr.bf16.mxu0 0
        %641 = vmatpush1.bf16.msra.mxu0 %v599
        %642 = vmatprep.subr.bf16.mxu0 0
        %643 = vmatpush1.bf16.msra.mxu0 %v600
        %644 = vmatprep.subr.bf16.mxu0 0
        %645 = vmatpush1.bf16.msra.mxu0 %v601
        %646 = vmatprep.subr.bf16.mxu0 0
        %647 = vmatpush1.bf16.msra.mxu0 %v602
        %648 = vmatprep.subr.bf16.mxu0 0
        %649 = vmatpush1.bf16.msra.mxu0 %v603
        %650 = vmatprep.subr.bf16.mxu0 0
        %651 = vmatpush1.bf16.msra.mxu0 %v604
        %652 = vmatprep.subr.bf16.mxu0 0
        %653 = vmatpush1.bf16.msra.mxu0 %v605
        %654 = vmatprep.mubr.bf16.mxu0 %v511
        %655 = vmatmul.mubr.bf16.gmra.mrb[0].mxu0 %v510
        %v656 = vpop.f32.mrb[0].mxu0
        %v657 = vadd.f32 0.0, %v656
        %v658 = vpop.f32.mrb[0].mxu0
        %v659 = vpop.f32.mrb[0].mxu0
        %v660 = vadd.f32 0.0, %v659
        %v661 = vpop.f32.mrb[0].mxu0
        %662 = vmatprep.mubr.bf16.mxu0 %v513
        %663 = vmatmul.mubr.bf16.gmra.mrb[0].mxu0 %v512
        %v664 = vpop.f32.mrb[0].mxu0
        %v665 = vadd.f32 0.0, %v664
        %v666 = vpop.f32.mrb[0].mxu0
        %v667 = vpop.f32.mrb[0].mxu0
        %v668 = vadd.f32 0.0, %v667
        %v669 = vpop.f32.mrb[0].mxu0
        %670 = vmatprep.mubr.bf16.mxu0 %v515
        %671 = vmatmul.mubr.bf16.gmra.mrb[0].mxu0 %v514
        %v672 = vpop.f32.mrb[0].mxu0
        %v673 = vadd.f32 0.0, %v672
        %v674 = vpop.f32.mrb[0].mxu0
        %v675 = vpop.f32.mrb[0].mxu0
        %v676 = vadd.f32 0.0, %v675
        %v677 = vpop.f32.mrb[0].mxu0
        %678 = vmatprep.mubr.bf16.mxu0 %v517
        %679 = vmatmul.mubr.bf16.gmra.mrb[0].mxu0 %v516
        %v680 = vpop.f32.mrb[0].mxu0
        %v681 = vadd.f32 0.0, %v680
        %v682 = vpop.f32.mrb[0].mxu0
        %v683 = vpop.f32.mrb[0].mxu0
        %v684 = vadd.f32 0.0, %v683
        %v685 = vpop.f32.mrb[0].mxu0
        %686 = vdwg.mxu0
        %v687 = vadd.f32 %v446, %v657
        %v688 = vadd.f32 %v447, %v660
        %v689 = vadd.f32 %v448, %v665
        %v690 = vadd.f32 %v449, %v668
        %v691 = vadd.f32 %v450, %v673
        %v692 = vadd.f32 %v451, %v676
        %v693 = vadd.f32 %v452, %v681
        %v694 = vadd.f32 %v453, %v684
        %695 = vst [vmem:[#allocation2] sm:$0xff] %v687
        %696 = vst [vmem:[#allocation2 + $0x8] sm:$0xff] %v688
        %697 = vst [vmem:[#allocation2 + $0x10] sm:$0xff] %v689
        %698 = vst [vmem:[#allocation2 + $0x18] sm:$0xff] %v690
        %699 = vst [vmem:[#allocation2 + $0x20] sm:$0xff] %v691
        %700 = vst [vmem:[#allocation2 + $0x28] sm:$0xff] %v692
        %701 = vst [vmem:[#allocation2 + $0x30] sm:$0xff] %v693
        %702 = vst [vmem:[#allocation2 + $0x38] sm:$0xff] %v694
        // Predicated region
        $region53: #{tpu_custom_call.1} parent=39 // pred_check
          %p703 = pneg %p374
        $region54: #{tpu_custom_call.1} parent=39 // pred_check_branch
          %705 = sbr.rel (%p703) target = $region56
        $region55: #{tpu_custom_call.1} parent=39 // pred_region
          %v706 = vld [vmem:[#allocation2] sm:$0xff]
          %v707 = vld [vmem:[#allocation2 + $0x8] sm:$0xff]
          %v708 = vld [vmem:[#allocation2 + $0x10] sm:$0xff]
          %v709 = vld [vmem:[#allocation2 + $0x18] sm:$0xff]
          %v710 = vld [vmem:[#allocation2 + $0x20] sm:$0xff]
          %v711 = vld [vmem:[#allocation2 + $0x28] sm:$0xff]
          %v712 = vld [vmem:[#allocation2 + $0x30] sm:$0xff]
          %v713 = vld [vmem:[#allocation2 + $0x38] sm:$0xff]
          %v714 = vld [vmem:[%s368] sm:$0x1]
          %v716 = vlaneseq
          %v717 = vshrl.u32 %v716, 7
          %v718 = vsub.s32 0, %v717
          %v719 = vrot.slane %v714, %v718
          %v721 = vmul.f32 %v706, %v719
          %v722 = vmul.f32 %v707, %v719
          %v723 = vmul.f32 %v708, %v719
          %v724 = vmul.f32 %v709, %v719
          %v725 = vmul.f32 %v710, %v719
          %v726 = vmul.f32 %v711, %v719
          %v727 = vmul.f32 %v712, %v719
          %v728 = vmul.f32 %v713, %v719
          %v729 = vld [vmem:[%s371] sm:$0x1]
          %v731 = vlaneseq
          %v732 = vshrl.u32 %v731, 7
          %v733 = vsub.s32 0, %v732
          %v734 = vrot.slane %v729, %v733
          %v736 = vadd.f32 %v721, %v734
          %v737 = vadd.f32 %v722, %v734
          %v738 = vadd.f32 %v723, %v734
          %v739 = vadd.f32 %v724, %v734
          %v740 = vadd.f32 %v725, %v734
          %v741 = vadd.f32 %v726, %v734
          %v742 = vadd.f32 %v727, %v734
          %v743 = vadd.f32 %v728, %v734
          %v744 = vxor.u32 %v736, 2147483648
          %v745 = vxor.u32 %v737, 2147483648
          %v746 = vxor.u32 %v738, 2147483648
          %v747 = vxor.u32 %v739, 2147483648
          %v748 = vxor.u32 %v740, 2147483648
          %v749 = vxor.u32 %v741, 2147483648
          %v750 = vxor.u32 %v742, 2147483648
          %v751 = vxor.u32 %v743, 2147483648
          %v752 = vmul.f32 %v744, 1.442695
          %v753 = vpow.pop %v752
          %v754 = vmul.f32 %v745, 1.442695
          %v755 = vpow.pop %v754
          %v756 = vmul.f32 %v746, 1.442695
          %v757 = vpow.pop %v756
          %v758 = vmul.f32 %v747, 1.442695
          %v759 = vpow.pop %v758
          %v760 = vmul.f32 %v748, 1.442695
          %v761 = vpow.pop %v760
          %v762 = vmul.f32 %v749, 1.442695
          %v763 = vpow.pop %v762
          %v764 = vmul.f32 %v750, 1.442695
          %v765 = vpow.pop %v764
          %v766 = vmul.f32 %v751, 1.442695
          %v767 = vpow.pop %v766
          %v768 = vadd.f32 %v753, 1.0
          %v769 = vadd.f32 %v755, 1.0
          %v770 = vadd.f32 %v757, 1.0
          %v771 = vadd.f32 %v759, 1.0
          %v772 = vadd.f32 %v761, 1.0
          %v773 = vadd.f32 %v763, 1.0
          %v774 = vadd.f32 %v765, 1.0
          %v775 = vadd.f32 %v767, 1.0
          %v776 = vrcp.pop %v768
          %v777 = vmul.f32 1.0, %v776
          %v778 = vrcp.pop %v769
          %v779 = vmul.f32 1.0, %v778
          %v780 = vrcp.pop %v770
          %v781 = vmul.f32 1.0, %v780
          %v782 = vrcp.pop %v771
          %v783 = vmul.f32 1.0, %v782
          %v784 = vrcp.pop %v772
          %v785 = vmul.f32 1.0, %v784
          %v786 = vrcp.pop %v773
          %v787 = vmul.f32 1.0, %v786
          %v788 = vrcp.pop %v774
          %v789 = vmul.f32 1.0, %v788
          %v790 = vrcp.pop %v775
          %v791 = vmul.f32 1.0, %v790
          %v792 = vmul.f32 %v736, %v777
          %v793 = vmul.f32 %v737, %v779
          %v794 = vmul.f32 %v738, %v781
          %v795 = vmul.f32 %v739, %v783
          %v796 = vmul.f32 %v740, %v785
          %v797 = vmul.f32 %v741, %v787
          %v798 = vmul.f32 %v742, %v789
          %v799 = vmul.f32 %v743, %v791
          %v800 = vpack.c.bf16 %v793, %v792
          %v801 = vpack.c.bf16 %v795, %v794
          %v802 = vpack.c.bf16 %v797, %v796
          %v803 = vpack.c.bf16 %v799, %v798
          %v808 = vunpack.c.l.b16 %v800
          %v809 = vunpack.c.h.b16 %v800
          %v810 = vunpack.c.l.b16 %v801
          %v811 = vunpack.c.h.b16 %v801
          %v812 = vunpack.c.l.b16 %v802
          %v813 = vunpack.c.h.b16 %v802
          %v814 = vunpack.c.l.b16 %v803
          %v815 = vunpack.c.h.b16 %v803
          %v816 = vpack.c.b16 %v808, %v808
          %v817 = vpack.c.b16 %v809, %v809
          %v818 = vpack.c.b16 %v810, %v810
          %v819 = vpack.c.b16 %v811, %v811
          %v820 = vpack.c.b16 %v812, %v812
          %v821 = vpack.c.b16 %v813, %v813
          %v822 = vpack.c.b16 %v814, %v814
          %v823 = vpack.c.b16 %v815, %v815
          %832 = vst [vmem:[%s353] sm:$0xf] %v816
          %833 = vst [vmem:[%s353 + $0x4] sm:$0xf] %v817
          %834 = vst [vmem:[%s353 + $0x8] sm:$0xf] %v818
          %835 = vst [vmem:[%s353 + $0xc] sm:$0xf] %v819
          %836 = vst [vmem:[%s353 + $0x10] sm:$0xf] %v820
          %837 = vst [vmem:[%s353 + $0x14] sm:$0xf] %v821
          %838 = vst [vmem:[%s353 + $0x18] sm:$0xf] %v822
          %839 = vst [vmem:[%s353 + $0x1c] sm:$0xf] %v823
        $region56: #{tpu_custom_call.1} parent=39 // pred_fallthru
          _
        %s840 = sand.u32 %s199, 1
        %s841 = scalar_lea.sflag [#allocation5], %s840
        %s842 = sand.u32 %s199, 1
        %s843 = smul.addr %s842, 32
        %s844 = scalar_lea.vmem [#allocation8], %s843
        // Predicated region
        $region57: #{tpu_custom_call.1} parent=39 // pred_check
          %p845 = pneg %p209
        $region58: #{tpu_custom_call.1} parent=39 // pred_check_branch
          %847 = sbr.rel (%p845) target = $region60
        $region59: #{tpu_custom_call.1} parent=39 // pred_region
          %s848 = smul.u32 8, %s30
          %s850 = ssub.s32 512, 512
          %851 = vsyncadd %s841, %s850
          %s852 = sadd.s32 %s31, %s848
          %s853 = smul.addr %s29, 8
          %s854 = sadd.s32 %s852, %s853
          %s855 = smul.addr %s854, 64
          %s856 = scalar_lea.hbm %s5, %s855
          %s857 = sshll.u32 %s844, 4
          %s858 = int_to_ptr.vmem [resolvable:$true] %s857
          %863 = dma.vmem_to_hbm [thread:$0]  %s858, 512, %s856, %s841, 64, 64, 4
        $region60: #{tpu_custom_call.1} parent=39 // pred_fallthru
          _
      $region40: #{tpu_custom_call.1} parent=5 // pred_fallthru
        _
      %p864 = scmp.le.s32.totalorder 2, %s18
      // Predicated region
      $region61: #{tpu_custom_call.1} parent=5 // pred_check
        %p865 = pneg %p864
      $region62: #{tpu_custom_call.1} parent=5 // pred_check_branch
        %867 = sbr.rel (%p865) target = $region64
      $region63: #{tpu_custom_call.1} parent=5 // pred_region
        %s868 = ssub.s32 %s18, 2
        // Predicated region
        $region65: #{tpu_custom_call.1} parent=63 // pred_check
          %p869 = pneg %p215
        $region66: #{tpu_custom_call.1} parent=63 // pred_check_branch
          %871 = sbr.rel (%p869) target = $region68
        $region67: #{tpu_custom_call.1} parent=63 // pred_region
          %s872 = sand.u32 %s200, 1
          %s873 = scalar_lea.sflag [#allocation5], %s872
          %s874 = sand.u32 %s200, 1
          %s875 = smul.addr %s874, 32
          %s876 = scalar_lea.vmem [#allocation8], %s875
          %877 = dma.done %s873, 512
        $region68: #{tpu_custom_call.1} parent=63 // pred_fallthru
          _
      $region64: #{tpu_custom_call.1} parent=5 // pred_fallthru
        _
    $region6: #{tpu_custom_call.1} parent=1 // loop_footer
      %s22 = sadd.s32 1, %s18
    $region7: #{tpu_custom_call.1} parent=1 // loop_footer_branch
      %17 = sbr.rel target = $region3
    $region8: #{tpu_custom_call.1} parent=1 // loop_exit
      _
    %878 = vsyncpa [#allocation4], 1
    %s879 = scalar_lea.sflag [#allocation4], 1
    %880 = vsyncpa %s879, 1
    %881 = vsyncpa [#allocation7], 1
    %882 = vsyncpa [#allocation5], 1
    %s883 = scalar_lea.sflag [#allocation5], 1
    %884 = vsyncpa %s883, 1

</llo_original>
